<compile_context>
chip_gen: v7x
topology: tpu7x:2x2x1
jax: 0.10.0
libtpu: 0.0.40
codegen_flags: <defaults>
</compile_context>

<pallas_src>
import jax
import jax.numpy as jnp
from jax.experimental import pallas as pl
from jax.experimental.pallas import tpu as pltpu

_MIB = 1024 * 1024


def _tpu_config():
    """Trace-time chip query -> (block_byte_budget, vmem_limit_bytes, two_tc)."""
    try:
        info = pltpu.get_tpu_info()
        vmem_cap = int(getattr(info, "vmem_capacity_bytes", 0)) or 128 * _MIB
    except Exception:
        # Detection failed: conservative settings that are safe on every
        # generation (2 arrays x 2 buffers x 3 MiB = 12 MiB << 32 MiB).
        return 3 * _MIB, 32 * _MIB, False
    if vmem_cap <= 64 * _MIB:
        # v7x-like: 64 MiB physical VMEM per TC, ~3.2 TB/s HBM, 2 TCs/chip.
        # Bigger blocks hide the ~0.35 us/step overhead at this bandwidth;
        # 2 x 2 x 8 MiB = 32 MiB fits under a raised 48 MiB scoped limit.
        return 8 * _MIB, 48 * _MIB, True
    # v5e / v6e: 128 MiB physical VMEM, single TensorCore.
    # 2 x 2 x 4 MiB = 16 MiB, well inside a 64 MiB scoped limit.
    return 4 * _MIB, 64 * _MIB, False


def normalization_pallas(x_nchw, mean_c, var_c):
    """x_nchw: (N, C, H, W) float32; mean_c/var_c: (C, 1, 1) buffers."""
    N, C, H, W = x_nchw.shape
    R, L = N * C, H * W

    # ---- wrapper glue (tiny: O(C) / O(R) work) ---------------------------
    # Fold the buffers into a per-row affine: out = x * scale + shift.
    scale_c = 1.0 / jnp.sqrt(var_c.reshape(C).astype(jnp.float32))      # (C,)
    shift_c = (-mean_c.reshape(C).astype(jnp.float32)) * scale_c        # (C,)
    scale_r = jnp.tile(scale_c, N).reshape(R, 1)                        # (R,1)
    shift_r = jnp.tile(shift_c, N).reshape(R, 1)                        # (R,1)

    # Lane-dense slab: pad the last dim up to a multiple of 128 so every
    # vld/vst is unmasked; padding is discarded after the call.
    x2d = x_nchw.reshape(R, L)
    Lp = ((L + 127) // 128) * 128
    if Lp != L:
        x2d = jnp.pad(x2d, ((0, 0), (0, Lp - L)))

    # ---- generation-aware row tiling -------------------------------------
    block_budget, vmem_limit, two_tc = _tpu_config()
    bytes_per_row = Lp * 4                               # f32
    max_rows = max(8, (block_budget // bytes_per_row) // 8 * 8)
    block_rows = R if R <= max_rows else max_rows        # full dim OR mult. of 8

    # v7x: the "parallel" axis shards across 2 TensorCores — make sure
    # mid/large inputs produce at least 2 grid steps instead of collapsing
    # into a single block (pure overhead on single-TC chips, so gated).
    total_bytes = R * bytes_per_row
    if two_tc and total_bytes > 4 * _MIB and R > 8:
        half_rows = max(8, (((R + 1) // 2) + 7) // 8 * 8)
        block_rows = min(block_rows, half_rows)

    nblocks = pl.cdiv(R, block_rows)
    # Partial last block (R % block_rows != 0): padded rows read clamped data
    # and their outputs are discarded by Pallas — harmless for this op.

    def kernel(x_ref, s_ref, t_ref, o_ref):
        # Single full-block FMA on the VPU; (block_rows, 1) scale/shift
        # broadcast across the 128-lane axis. No EUP/XLU/MXU work.
        o_ref[...] = (x_ref[...] * s_ref[...] + t_ref[...]).astype(o_ref.dtype)

    out2d = pl.pallas_call(
        kernel,
        out_shape=jax.ShapeDtypeStruct((R, Lp), x2d.dtype),
        grid=(nblocks,),
        in_specs=[
            pl.BlockSpec((block_rows, Lp), lambda i: (i, 0)),   # x row block
            pl.BlockSpec((block_rows, 1), lambda i: (i, 0)),    # per-row scale
            pl.BlockSpec((block_rows, 1), lambda i: (i, 0)),    # per-row shift
        ],
        out_specs=pl.BlockSpec((block_rows, Lp), lambda i: (i, 0)),
        input_output_aliases={0: 0},   # reuse x's buffer when donatable
        compiler_params=pltpu.CompilerParams(
            dimension_semantics=("parallel",),
            vmem_limit_bytes=vmem_limit,
        ),
    )(x2d, scale_r, shift_r)

    if Lp != L:
        out2d = out2d[:, :L]
    return out2d.reshape(N, C, H, W)


normalization_pallas_jit = jax.jit(normalization_pallas)


if __name__ == "__main__":
    key = jax.random.PRNGKey(0)
    kx, km, kv = jax.random.split(key, 3)
    N, C, H, W = 2, 4, 16, 16

    x = jax.random.normal(kx, (N, C, H, W), dtype=jnp.float32)

    # Buffers exactly as in Normalization.__init__ (shape = (C, 1, 1)):
    mean = jnp.zeros((C, 1, 1), dtype=jnp.float32)
    variance = jnp.ones((C, 1, 1), dtype=jnp.float32)

    ref = (x - mean[None]) / jnp.sqrt(variance[None])
    out = jax.block_until_ready(normalization_pallas_jit(x, mean, variance))
    assert out.shape == x.shape and out.dtype == x.dtype
    assert jnp.allclose(out, ref, atol=1e-6, rtol=1e-6)

    # Second check with non-trivial buffer values to exercise the fused
    # scale/shift math.
    mean2 = jax.random.normal(km, (C, 1, 1), dtype=jnp.float32)
    variance2 = jax.random.uniform(kv, (C, 1, 1), dtype=jnp.float32,
                                   minval=0.5, maxval=2.0)
    ref2 = (x - mean2[None]) / jnp.sqrt(variance2[None])
    out2 = jax.block_until_ready(normalization_pallas_jit(x, mean2, variance2))
    assert jnp.allclose(out2, ref2, atol=1e-5, rtol=1e-5)

    print("KERNEL_OK")
</pallas_src>

<mosaic_0001>
module attributes {stable_mosaic.version = 11 : i64} {
  func.func @kernel(%arg0: i32, %arg1: memref<8x256xf32, #tpu.memory_space<vmem>>, %arg2: memref<8x1xf32, #tpu.memory_space<vmem>>, %arg3: memref<8x1xf32, #tpu.memory_space<vmem>>, %arg4: memref<8x256xf32, #tpu.memory_space<vmem>>) attributes {dimension_semantics = [#tpu.dimension_semantics<parallel>], iteration_bounds = array<i64: 1>, scalar_prefetch = 0 : i64, scratch_operands = 0 : i64, tpu.core_type = #tpu.core_type<tc>, window_params = [{transform_indices = @transform_0, window_bounds = array<i64: 8, 256>}, {transform_indices = @transform_1, window_bounds = array<i64: 8, 1>}, {transform_indices = @transform_2, window_bounds = array<i64: 8, 1>}, {transform_indices = @transform_3, window_bounds = array<i64: 8, 256>}]} {
    %c0 = arith.constant 0 : index
    %c0_0 = arith.constant 0 : index
    %0 = vector.load %arg1[%c0, %c0_0] : memref<8x256xf32, #tpu.memory_space<vmem>>, vector<8x256xf32>
    %c0_1 = arith.constant 0 : index
    %c0_2 = arith.constant 0 : index
    %1 = vector.load %arg2[%c0_1, %c0_2] : memref<8x1xf32, #tpu.memory_space<vmem>>, vector<8x1xf32>
    %2 = vector.broadcast %1 : vector<8x1xf32> to vector<8x256xf32>
    %3 = arith.mulf %0, %2 : vector<8x256xf32>
    %c0_3 = arith.constant 0 : index
    %c0_4 = arith.constant 0 : index
    %4 = vector.load %arg3[%c0_3, %c0_4] : memref<8x1xf32, #tpu.memory_space<vmem>>, vector<8x1xf32>
    %5 = vector.broadcast %4 : vector<8x1xf32> to vector<8x256xf32>
    %6 = arith.addf %3, %5 : vector<8x256xf32>
    %c0_5 = arith.constant 0 : index
    %c0_6 = arith.constant 0 : index
    %7 = vector.load %arg4[%c0_5, %c0_6] : memref<8x256xf32, #tpu.memory_space<vmem>>, vector<8x256xf32>
    tpu.vector_store %arg4[%c0_5, %c0_6], %6 {strides = array<i32>} : memref<8x256xf32, #tpu.memory_space<vmem>>, vector<8x256xf32>,
    return
  }
  func.func @transform_0(%arg0: i32) -> (i32, i32) {
    %c0_i32 = arith.constant 0 : i32
    %c0_i32_0 = arith.constant 0 : i32
    return %arg0, %c0_i32 : i32, i32
  }
  func.func @transform_1(%arg0: i32) -> (i32, i32) {
    %c0_i32 = arith.constant 0 : i32
    %c0_i32_0 = arith.constant 0 : i32
    return %arg0, %c0_i32 : i32, i32
  }
  func.func @transform_2(%arg0: i32) -> (i32, i32) {
    %c0_i32 = arith.constant 0 : i32
    %c0_i32_0 = arith.constant 0 : i32
    return %arg0, %c0_i32 : i32, i32
  }
  func.func @transform_3(%arg0: i32) -> (i32, i32) {
    %c0_i32 = arith.constant 0 : i32
    %c0_i32_0 = arith.constant 0 : i32
    return %arg0, %c0_i32 : i32, i32
  }
}

</mosaic_0001>

<llo_original>
// kernel: tile.18
$region0: #{tile.18}
  #allocation0 [shape = 's32[1]{0}', space=sflag, size = 0x4, scoped, tag = 'scoped memory for tile.18']
  %s0 = inlined_call_operand.vmem [shape: f32[4], index: 0, kind: input, shape index: {}]
  %s1 = inlined_call_operand.vmem [shape: f32[2,4], index: 1, kind: output, shape index: {}]
  // Predicated region
  $region2: #{tile.18} parent=0 // pred_check
    _
  $region3: #{tile.18} parent=0 // pred_check_branch
    %3 = sbr.rel (0) target = $region5
  $region4: #{tile.18} parent=0 // pred_region
    _
  $region5: #{tile.18} parent=0 // pred_fallthru
    _
  %v4 = vld [vmem:[%s0] ss:$0 sm:$0xff]
  %5 = vst [vmem:[%s1] sm:$0x3] %v4

// kernel: tile.0
$region0: #{tile.0}
  %s0 = inlined_call_operand.vmem [shape: f32[2,4], index: 0, kind: input, shape index: {}]
  %s1 = inlined_call_operand.vmem [shape: f32[8,1], index: 1, kind: output, shape index: {}]
  $region1: #{tile.0} parent=0
    #allocation0 [shape = 'u8[4096]{0}', space=vmem, size = 0x1000, scoped, tag = 'scoped mem for input reshape']
    %s3 = sshllo.u32 0, 2
    %v4 = vld [vmem:[%s0] sm:%s3]
    %5 = vst [vmem:[#allocation0] sm:%s3] %v4
    %v6 = vld [vmem:[#allocation0] sm:$0x3]
    %vm7 = vcmask 7168
    %8 = vst.msk [vmem:[%s1] ss:$4 sm:$0x3] %vm7, %v6
    %v9 = vld [vmem:[#allocation0] sm:$0x3]
    %10 = vrot.lane.b32.xlu0 %v9, 127
    %v11 = vpop.permute.xlu0 %10
    %vm12 = vcmask 7168
    %s13 = scalar_lea.vmem %s1, 1
    %14 = vst.msk [vmem:[%s13] ss:$4 sm:$0x3] %vm12, %v11
    %v15 = vld [vmem:[#allocation0] sm:$0x3]
    %16 = vrot.lane.b32.xlu0 %v15, 126
    %v17 = vpop.permute.xlu0 %16
    %vm18 = vcmask 7168
    %s19 = scalar_lea.vmem %s1, 2
    %20 = vst.msk [vmem:[%s19] ss:$4 sm:$0x3] %vm18, %v17
    %v21 = vld [vmem:[#allocation0] sm:$0x3]
    %22 = vrot.lane.b32.xlu0 %v21, 125
    %v23 = vpop.permute.xlu0 %22
    %vm24 = vcmask 7168
    %s25 = scalar_lea.vmem %s1, 3
    %26 = vst.msk [vmem:[%s25] ss:$4 sm:$0x3] %vm24, %v23

// kernel: normalization_pallas.1
$region0: #{normalization_pallas.1}
  #allocation0 [shape = 'u32[]', space=smem, size = 0x4, offset = 0x4, fixed_abs, tag = 'smem constant byte address 0x4 - core index']
  #allocation1 [shape = 'u32[144,128]{1,0:T(1,128)}', space=vmem, size = 0x12000, scoped, tag = 'internal scratch']
  %s0 = inlined_call_operand.vmem [shape: f32[8,256], index: 0, kind: input, shape index: {}, may-alias: {0,3}]
  %s1 = inlined_call_operand.vmem [shape: f32[8,1], index: 1, kind: input, shape index: {}]
  %s2 = inlined_call_operand.vmem [shape: f32[8,1], index: 2, kind: input, shape index: {}]
  %s3 = inlined_call_operand.vmem [shape: f32[8,256], index: 3, kind: output, shape index: {}, may-alias: {0,3}]
  %s4 = sld [smem:[#allocation0]]
  $region22: #{normalization_pallas.1} parent=0
    _
  %s6 = ssub.s32 1, %s4
  %s7 = scalar_select 0, %s6, %s4
  // Predicated region
  $region2: #{normalization_pallas.1} parent=0 // pred_check
    _
  $region3: #{normalization_pallas.1} parent=0 // pred_check_branch
    %9 = sbr.rel (0) target = $region5
  $region4: #{normalization_pallas.1} parent=0 // pred_region
    _
  $region5: #{normalization_pallas.1} parent=0 // pred_fallthru
    _
  // Predicated region
  $region6: #{normalization_pallas.1} parent=0 // pred_check
    _
  $region7: #{normalization_pallas.1} parent=0 // pred_check_branch
    %11 = sbr.rel (0) target = $region9
  $region8: #{normalization_pallas.1} parent=0 // pred_region
    _
  $region9: #{normalization_pallas.1} parent=0 // pred_fallthru
    _
  // Predicated region
  $region10: #{normalization_pallas.1} parent=0 // pred_check
    _
  $region11: #{normalization_pallas.1} parent=0 // pred_check_branch
    %13 = sbr.rel (0) target = $region13
  $region12: #{normalization_pallas.1} parent=0 // pred_region
    _
  $region13: #{normalization_pallas.1} parent=0 // pred_fallthru
    _
  %v14 = vld [vmem:[%s0] sm:$0xff]
  %v15 = vld [vmem:[%s0 + $0x8] sm:$0xff]
  %v16 = vld [vmem:[%s1] sm:$0xff]
  %18 = vset.pattern.permute.xlu0 0
  %19 = vperm.xlu0 %18, %v16
  %v20 = vpop.permute.xlu0 %19
  %v22 = vmul.f32 %v14, %v20
  %v23 = vmul.f32 %v15, %v20
  %v24 = vld [vmem:[%s2] sm:$0xff]
  %26 = vset.pattern.permute.xlu0 0
  %27 = vperm.xlu0 %26, %v24
  %v28 = vpop.permute.xlu0 %27
  %v30 = vadd.f32 %v22, %v28
  %v31 = vadd.f32 %v23, %v28
  %32 = vst [vmem:[%s3] sm:$0xff] %v30
  %33 = vst [vmem:[%s3 + $0x8] sm:$0xff] %v31
  // Predicated region
  $region14: #{normalization_pallas.1} parent=0 // pred_check
    _
  $region15: #{normalization_pallas.1} parent=0 // pred_check_branch
    %35 = sbr.rel (0) target = $region17
  $region16: #{normalization_pallas.1} parent=0 // pred_region
    _
  $region17: #{normalization_pallas.1} parent=0 // pred_fallthru
    _
  // Predicated region
  $region18: #{normalization_pallas.1} parent=0 // pred_check
    _
  $region19: #{normalization_pallas.1} parent=0 // pred_check_branch
    %37 = sbr.rel (0) target = $region21
  $region20: #{normalization_pallas.1} parent=0 // pred_region
    _
  $region21: #{normalization_pallas.1} parent=0 // pred_fallthru
    _

</llo_original>
